<compile_context>
chip_gen: v5e
topology: v5e:2x2
jax: 0.10.0
libtpu: 0.0.40
codegen_flags: <defaults>
</compile_context>

<pallas_src>
import math
import functools

import jax
import jax.numpy as jnp
from jax import lax
from jax.experimental import pallas as pl
from jax.experimental.pallas import tpu as pltpu


def _round_up(x, m):
    return (x + m - 1) // m * m


# ---------------------------------------------------------------------------
# Kernels
# ---------------------------------------------------------------------------

def _gelu_exact_f32(h):
    # Exact (erf) GELU, matches torch.nn.GELU(approximate='none').
    # TODO(synk): switch to tanh-approx GELU (EUP slot) only if a bundle dump
    # shows the VALU slot saturating.
    return 0.5 * h * (1.0 + lax.erf(h * (1.0 / math.sqrt(2.0))))


def _mlp_kernel_single(x_ref, wfc_ref, bfc_ref, wproj_ref, bproj_ref, o_ref):
    """Single-pass kernel: whole hidden dim in one tile (th == H)."""
    # x_ref:     (tm, D)  compute dtype (bf16 in production)
    # wfc_ref:   (D, H)   (in, out) layout
    # bfc_ref:   (1, H)   f32
    # wproj_ref: (H, D)   (in, out) layout
    # bproj_ref: (1, D)   f32
    h = jnp.dot(x_ref[...], wfc_ref[...], preferred_element_type=jnp.float32)
    h = _gelu_exact_f32(h + bfc_ref[...].astype(jnp.float32))
    y = jnp.dot(h.astype(wproj_ref.dtype), wproj_ref[...],
                preferred_element_type=jnp.float32)
    # dropout: inference-mode identity.
    # TODO(synk): training-mode dropout would use pltpu.prng_seed +
    # pltpu.prng_random_bits to build a keep-mask here.
    o_ref[...] = (y + bproj_ref[...].astype(jnp.float32)).astype(o_ref.dtype)


def _mlp_kernel_tiled(x_ref, wfc_ref, bfc_ref, wproj_ref, bproj_ref, o_ref,
                      acc_ref):
    """Hidden-dim-tiled kernel with an f32 accumulator (grid axis 1 = H tiles)."""
    # x_ref:     (tm, D)   compute dtype (reused across all k steps)
    # wfc_ref:   (D, th)   (in, out) layout tile
    # bfc_ref:   (1, th)   f32
    # wproj_ref: (th, D)   (in, out) layout tile
    # bproj_ref: (1, D)    f32
    # o_ref:     (tm, D)   output tile (resident across the hidden axis)
    # acc_ref:   (tm, D)   f32 accumulator scratch
    k = pl.program_id(1)
    last = pl.num_programs(1) - 1

    @pl.when(k == 0)
    def _():
        # Seed the accumulator with the projection bias: the finalize step then
        # only needs (acc + partial), no extra broadcast-add.
        acc_ref[...] = jnp.broadcast_to(
            bproj_ref[...].astype(jnp.float32), acc_ref.shape)

    h = jnp.dot(x_ref[...], wfc_ref[...], preferred_element_type=jnp.float32)
    h = _gelu_exact_f32(h + bfc_ref[...].astype(jnp.float32))
    partial = jnp.dot(h.astype(wproj_ref.dtype), wproj_ref[...],
                      preferred_element_type=jnp.float32)

    @pl.when(k < last)
    def _():
        acc_ref[...] += partial

    @pl.when(k == last)
    def _():
        # Write out directly from (acc + partial): saves one (tm, D) f32
        # store + load on the final iteration (relieves the vst slot on v5e).
        # dropout: inference-mode identity.
        o_ref[...] = (acc_ref[...] + partial).astype(o_ref.dtype)


# ---------------------------------------------------------------------------
# Generation-aware tile / VMEM selection
# ---------------------------------------------------------------------------

def _tpu_kind():
    try:
        return jax.devices()[0].device_kind.lower()
    except Exception:
        return ""


def _vmem_limit_bytes(kind):
    try:
        phys = int(pltpu.get_tpu_info().vmem_capacity_bytes)
    except Exception:
        phys = (64 << 20) if "v7" in kind else (128 << 20)
    limit = min(phys - (16 << 20), 112 << 20)
    if "v7" in kind:
        # 64 MiB per TensorCore on v7x -- stay well inside it.
        limit = min(limit, 48 << 20)
    return max(limit, 32 << 20)


def _vmem_estimate(tm, th, D, x_bytes, w_bytes, out_bytes, tiled):
    est = 2 * tm * D * x_bytes            # x, double-buffered (compute dtype)
    est += 2 * 2 * (D * th) * w_bytes     # W_fc + W_proj tiles, double-buffered
    est += 2 * (th + D) * 4               # bias tiles (f32)
    est += 2 * tm * D * out_bytes         # output, double-buffered
    if tiled:
        est += tm * D * 4                 # f32 accumulator scratch
    return est


def _th_candidates(H, align, th_cap=1024):
    """Divisors of H, lane-aligned, largest first; full H (single pass) first."""
    cands = [H]
    for a in ((align, 128) if align != 128 else (128,)):
        t = min(th_cap, H)
        t -= t % a
        while t >= a:
            if t < H and H % t == 0 and t not in cands:
                cands.append(t)
            t -= a
    return cands


def _pick_tiles(M, D, H, x_bytes, w_bytes, out_bytes, kind, vmem_limit):
    # v6e/v7x MXU is 2x256x256 -> prefer 256-multiples; v5e (4x128x128) is
    # fine with 128-multiples.
    align = 128 if "v5" in kind else 256
    budget = int(vmem_limit * 0.8)

    tm0 = min(512, _round_up(M, 8))
    # v7x has 2 TensorCores sharded over the 'parallel' row axis: make sure
    # there are at least two row tiles so neither core idles.
    if "v7" in kind and M >= 16 and pl.cdiv(M, tm0) < 2:
        tm0 = _round_up(pl.cdiv(M, 2), 8)

    cands = _th_candidates(H, align)
    tm_options = [tm0] + [t for t in (256, 128, 64) if t < tm0]
    for tm in tm_options:
        for th in cands:
            if _vmem_estimate(tm, th, D, x_bytes, w_bytes, out_bytes,
                              tiled=(th != H)) <= budget:
                return tm, th
    return tm_options[-1], cands[-1]  # best effort


# ---------------------------------------------------------------------------
# Forward
# ---------------------------------------------------------------------------

@functools.partial(jax.jit, static_argnames=("tm", "th"))
def mlp_forward(x, w_fc_t, b_fc, w_proj_t, b_proj, *, tm=None, th=None):
    """GPT MLP forward (inference; dropout = identity).

    x:        (B, T, D)
    w_fc_t:   (D, H)  c_fc weight, pre-transposed to (in, out) layout and
                      pre-cast to the matmul compute dtype (bf16 in prod)
    b_fc:     (H,)
    w_proj_t: (H, D)  c_proj weight, pre-transposed to (in, out) layout, bf16
    b_proj:   (D,)
    """
    B, T, D = x.shape
    D_in, H = w_fc_t.shape
    assert D_in == D and w_proj_t.shape == (H, D)
    M = B * T

    compute_dtype = w_fc_t.dtype
    out_dtype = x.dtype

    kind = _tpu_kind()
    vmem_limit = _vmem_limit_bytes(kind)
    x_bytes = jnp.dtype(compute_dtype).itemsize
    w_bytes = jnp.dtype(compute_dtype).itemsize
    out_bytes = jnp.dtype(out_dtype).itemsize

    if tm is None or th is None:
        tm_auto, th_auto = _pick_tiles(M, D, H, x_bytes, w_bytes, out_bytes,
                                       kind, vmem_limit)
        tm = tm_auto if tm is None else tm
        th = th_auto if th is None else th

    tm_eff = min(tm, _round_up(M, 8))
    assert tm_eff % 8 == 0, "row tile must be a multiple of 8"
    th_eff = min(th, H)
    assert H % th_eff == 0, "hidden dim must be divisible by the hidden tile"
    assert th_eff == H or th_eff % 128 == 0, "hidden tile must be lane-aligned"

    # Cast x once here (not per hidden step in the kernel); biases stay f32.
    x2 = x.reshape(M, D).astype(compute_dtype)
    bfc2 = b_fc.reshape(1, H).astype(jnp.float32)
    bproj2 = b_proj.reshape(1, D).astype(jnp.float32)

    # No explicit padding: Pallas masks the partial boundary row block.
    grid_m = pl.cdiv(M, tm_eff)

    # TODO(synk): if profiles show exposed weight DMA (tiny tm / decode shapes),
    # add pipeline_mode=pl.Buffered(3) to the weight BlockSpecs (VMEM allowing).
    if th_eff == H:
        kernel = _mlp_kernel_single
        grid = (grid_m,)
        in_specs = [
            pl.BlockSpec((tm_eff, D), lambda i: (i, 0)),   # x rows
            pl.BlockSpec((D, H),      lambda i: (0, 0)),   # W_fc (in, out)
            pl.BlockSpec((1, H),      lambda i: (0, 0)),   # b_fc
            pl.BlockSpec((H, D),      lambda i: (0, 0)),   # W_proj (in, out)
            pl.BlockSpec((1, D),      lambda i: (0, 0)),   # b_proj
        ]
        out_spec = pl.BlockSpec((tm_eff, D), lambda i: (i, 0))
        scratch = []
        dims = ("parallel",)
    else:
        kernel = _mlp_kernel_tiled
        grid = (grid_m, H // th_eff)
        in_specs = [
            pl.BlockSpec((tm_eff, D),  lambda i, k: (i, 0)),   # x rows (reused)
            pl.BlockSpec((D, th_eff),  lambda i, k: (0, k)),   # W_fc tile
            pl.BlockSpec((1, th_eff),  lambda i, k: (0, k)),   # b_fc tile
            pl.BlockSpec((th_eff, D),  lambda i, k: (k, 0)),   # W_proj tile
            pl.BlockSpec((1, D),       lambda i, k: (0, 0)),   # b_proj
        ]
        out_spec = pl.BlockSpec((tm_eff, D), lambda i, k: (i, 0))
        scratch = [pltpu.VMEM((tm_eff, D), jnp.float32)]
        dims = ("parallel", "arbitrary")

    out = pl.pallas_call(
        kernel,
        out_shape=jax.ShapeDtypeStruct((M, D), out_dtype),
        grid_spec=pltpu.PrefetchScalarGridSpec(
            num_scalar_prefetch=0,
            grid=grid,
            in_specs=in_specs,
            out_specs=out_spec,
            scratch_shapes=scratch,
        ),
        compiler_params=pltpu.CompilerParams(
            dimension_semantics=dims,
            vmem_limit_bytes=int(vmem_limit),
        ),
    )(x2, w_fc_t, bfc2, w_proj_t, bproj2)

    return out.reshape(B, T, D)


# ---------------------------------------------------------------------------
# Demo / self-check
# ---------------------------------------------------------------------------

if __name__ == "__main__":
    # Small-but-lane-aligned config: n_embd=128, mlp_expansion_factor=4 -> H=512,
    # bias=True, dropout=0.0 (inference), batch=2, seq=9 (M=18 exercises the
    # partial boundary row block without any explicit padding).
    B, T, D = 2, 9, 128
    H = D * 4

    key = jax.random.PRNGKey(0)
    kx, kwf, kbf, kwp, kbp = jax.random.split(key, 5)

    x = jax.random.normal(kx, (B, T, D), dtype=jnp.float32)
    # deterministic "PyTorch-like" init scale (uniform +- 1/sqrt(fan_in))
    w_fc = jax.random.uniform(kwf, (H, D), jnp.float32,
                              -1.0 / math.sqrt(D), 1.0 / math.sqrt(D))
    b_fc = jax.random.uniform(kbf, (H,), jnp.float32,
                              -1.0 / math.sqrt(D), 1.0 / math.sqrt(D))
    w_proj = jax.random.uniform(kwp, (D, H), jnp.float32,
                                -1.0 / math.sqrt(H), 1.0 / math.sqrt(H))
    b_proj = jax.random.uniform(kbp, (D,), jnp.float32,
                                -1.0 / math.sqrt(H), 1.0 / math.sqrt(H))

    # One-time weight prep (outside the jitted forward): transpose PyTorch
    # (out, in) layout to (in, out) so the kernel does plain NN contraction
    # (no per-tile XLU transposes), and cast to bf16 for the MXU.
    w_fc_t = jnp.asarray(w_fc.T, dtype=jnp.bfloat16)      # (D, H)
    w_proj_t = jnp.asarray(w_proj.T, dtype=jnp.bfloat16)  # (H, D)

    # pure-JAX f32 reference (tolerance accounts for bf16 matmul operands)
    h_ref = x.reshape(-1, D) @ w_fc.T + b_fc
    h_ref = 0.5 * h_ref * (1.0 + lax.erf(h_ref / math.sqrt(2.0)))
    y_ref = (h_ref @ w_proj.T + b_proj).reshape(B, T, D)

    # 1) auto-tiled path (for this small H the single-pass kernel is chosen)
    y1 = mlp_forward(x, w_fc_t, b_fc, w_proj_t, b_proj)
    jax.block_until_ready(y1)
    assert jnp.allclose(y1, y_ref, atol=2e-2, rtol=2e-2), "auto path mismatch"

    # 2) force the hidden-dim-tiled accumulator path + a partial row tile
    y2 = mlp_forward(x, w_fc_t, b_fc, w_proj_t, b_proj, tm=16, th=256)
    jax.block_until_ready(y2)
    assert jnp.allclose(y2, y_ref, atol=2e-2, rtol=2e-2), "tiled path mismatch"

    print("KERNEL_OK")
</pallas_src>

<mosaic_0001>
module attributes {stable_mosaic.version = 11 : i64} {
  func.func @_mlp_kernel_single(%arg0: i32, %arg1: memref<24x128xbf16, #tpu.memory_space<vmem>>, %arg2: memref<128x512xbf16, #tpu.memory_space<vmem>>, %arg3: memref<1x512xf32, #tpu.memory_space<vmem>>, %arg4: memref<512x128xbf16, #tpu.memory_space<vmem>>, %arg5: memref<1x128xf32, #tpu.memory_space<vmem>>, %arg6: memref<24x128xf32, #tpu.memory_space<vmem>>) attributes {dimension_semantics = [#tpu.dimension_semantics<parallel>], iteration_bounds = array<i64: 1>, scalar_prefetch = 0 : i64, scratch_operands = 0 : i64, tpu.core_type = #tpu.core_type<tc>, window_params = [{transform_indices = @transform_0, window_bounds = array<i64: 24, 128>}, {pipeline_mode = #tpu.pipeline_mode<synchronous>, transform_indices = @transform_1, window_bounds = array<i64: 128, 512>}, {pipeline_mode = #tpu.pipeline_mode<synchronous>, transform_indices = @transform_2, window_bounds = array<i64: 1, 512>}, {pipeline_mode = #tpu.pipeline_mode<synchronous>, transform_indices = @transform_3, window_bounds = array<i64: 512, 128>}, {pipeline_mode = #tpu.pipeline_mode<synchronous>, transform_indices = @transform_4, window_bounds = array<i64: 1, 128>}, {transform_indices = @transform_5, window_bounds = array<i64: 24, 128>}]} {
    %c0 = arith.constant 0 : index
    %c0_0 = arith.constant 0 : index
    %0 = vector.load %arg1[%c0, %c0_0] : memref<24x128xbf16, #tpu.memory_space<vmem>>, vector<24x128xbf16>
    %c0_1 = arith.constant 0 : index
    %c0_2 = arith.constant 0 : index
    %1 = vector.load %arg2[%c0_1, %c0_2] : memref<128x512xbf16, #tpu.memory_space<vmem>>, vector<128x512xbf16>
    %cst = arith.constant dense<0.000000e+00> : vector<24x512xf32>
    %2 = tpu.matmul %0, %1, %cst {dimension_numbers = #tpu.dot_dimension_numbers<[1], [0], [0], [1], [0, 0, 1, 1], [], []>} : vector<24x128xbf16>, vector<128x512xbf16>, vector<24x512xf32> -> vector<24x512xf32>
    %c0_3 = arith.constant 0 : index
    %c0_4 = arith.constant 0 : index
    %3 = vector.load %arg3[%c0_3, %c0_4] : memref<1x512xf32, #tpu.memory_space<vmem>>, vector<1x512xf32>
    %4 = vector.broadcast %3 : vector<1x512xf32> to vector<24x512xf32>
    %5 = arith.addf %2, %4 : vector<24x512xf32>
    %cst_5 = arith.constant 5.000000e-01 : f32
    %6 = vector.broadcast %cst_5 : f32 to vector<24x512xf32>
    %7 = arith.mulf %6, %5 : vector<24x512xf32>
    %cst_6 = arith.constant 0.707106769 : f32
    %8 = vector.broadcast %cst_6 : f32 to vector<24x512xf32>
    %9 = arith.mulf %5, %8 : vector<24x512xf32>
    %10 = math.erf %9 : vector<24x512xf32>
    %cst_7 = arith.constant 1.000000e+00 : f32
    %11 = vector.broadcast %cst_7 : f32 to vector<24x512xf32>
    %12 = arith.addf %11, %10 : vector<24x512xf32>
    %13 = arith.mulf %7, %12 : vector<24x512xf32>
    %14 = arith.truncf %13 : vector<24x512xf32> to vector<24x512xbf16>
    %c0_8 = arith.constant 0 : index
    %c0_9 = arith.constant 0 : index
    %15 = vector.load %arg4[%c0_8, %c0_9] : memref<512x128xbf16, #tpu.memory_space<vmem>>, vector<512x128xbf16>
    %cst_10 = arith.constant dense<0.000000e+00> : vector<24x128xf32>
    %16 = tpu.matmul %14, %15, %cst_10 {dimension_numbers = #tpu.dot_dimension_numbers<[1], [0], [0], [1], [0, 0, 1, 1], [], []>} : vector<24x512xbf16>, vector<512x128xbf16>, vector<24x128xf32> -> vector<24x128xf32>
    %c0_11 = arith.constant 0 : index
    %c0_12 = arith.constant 0 : index
    %17 = vector.load %arg5[%c0_11, %c0_12] : memref<1x128xf32, #tpu.memory_space<vmem>>, vector<1x128xf32>
    %18 = vector.broadcast %17 : vector<1x128xf32> to vector<24x128xf32>
    %19 = arith.addf %16, %18 : vector<24x128xf32>
    %c0_13 = arith.constant 0 : index
    %c0_14 = arith.constant 0 : index
    %20 = vector.load %arg6[%c0_13, %c0_14] : memref<24x128xf32, #tpu.memory_space<vmem>>, vector<24x128xf32>
    tpu.vector_store %arg6[%c0_13, %c0_14], %19 {strides = array<i32>} : memref<24x128xf32, #tpu.memory_space<vmem>>, vector<24x128xf32>,
    return
  }
  func.func @transform_0(%arg0: i32) -> (i32, i32) {
    %c0_i32 = arith.constant 0 : i32
    %c0_i32_0 = arith.constant 0 : i32
    return %arg0, %c0_i32 : i32, i32
  }
  func.func @transform_1(%arg0: i32) -> (i32, i32) {
    %c0_i32 = arith.constant 0 : i32
    %c0_i32_0 = arith.constant 0 : i32
    %c0_i32_1 = arith.constant 0 : i32
    return %c0_i32, %c0_i32_0 : i32, i32
  }
  func.func @transform_2(%arg0: i32) -> (i32, i32) {
    %c0_i32 = arith.constant 0 : i32
    %c0_i32_0 = arith.constant 0 : i32
    %c0_i32_1 = arith.constant 0 : i32
    return %c0_i32, %c0_i32_0 : i32, i32
  }
  func.func @transform_3(%arg0: i32) -> (i32, i32) {
    %c0_i32 = arith.constant 0 : i32
    %c0_i32_0 = arith.constant 0 : i32
    %c0_i32_1 = arith.constant 0 : i32
    return %c0_i32, %c0_i32_0 : i32, i32
  }
  func.func @transform_4(%arg0: i32) -> (i32, i32) {
    %c0_i32 = arith.constant 0 : i32
    %c0_i32_0 = arith.constant 0 : i32
    %c0_i32_1 = arith.constant 0 : i32
    return %c0_i32, %c0_i32_0 : i32, i32
  }
  func.func @transform_5(%arg0: i32) -> (i32, i32) {
    %c0_i32 = arith.constant 0 : i32
    %c0_i32_0 = arith.constant 0 : i32
    return %arg0, %c0_i32 : i32, i32
  }
}

</mosaic_0001>

<llo_original>
// kernel: mlp_forward.1
$region0: #{mlp_forward.1}
  #allocation0 [shape = 'u32[]', space=smem, size = 0x4, offset = 0x4, fixed_abs, tag = 'smem constant byte address 0x4 - core index']
  #allocation1 [shape = 'u32[72,128]{1,0:T(1,128)}', space=vmem, size = 0x9000, scoped, tag = 'internal scratch']
  %s0 = inlined_call_operand.vmem [shape: bf16[18,128], index: 0, kind: input, shape index: {}]
  %s1 = inlined_call_operand.hbm [shape: bf16[128,512], index: 1, kind: input, shape index: {}]
  %s2 = inlined_call_operand.vmem [shape: f32[1,512], index: 2, kind: input, shape index: {}]
  %s3 = inlined_call_operand.hbm [shape: bf16[512,128], index: 3, kind: input, shape index: {}]
  %s4 = inlined_call_operand.vmem [shape: f32[1,128], index: 4, kind: input, shape index: {}]
  %s5 = inlined_call_operand.vmem [shape: f32[18,128], index: 5, kind: output, shape index: {}]
  %s6 = sld [smem:[#allocation0]]
  $region38: #{mlp_forward.1} parent=0
    _
  %s8 = ssub.s32 1, %s6
  %s9 = scalar_select 0, %s8, %s6
  $region1: #{mlp_forward.1} parent=0
    #allocation2 [shape = 'u8[131072]{0}', space=vmem, size = 0x20000, scoped, tag = 'input window, operand 1, single buffered']
    #allocation3 [shape = 's32[1]{0}', space=sflag, size = 0x4, scoped, tag = 'scoped memory for mlp_forward.1']
    #allocation4 [shape = 'u8[131072]{0}', space=vmem, size = 0x20000, scoped, tag = 'input window, operand 3, single buffered']
    #allocation5 [shape = 's32[1]{0}', space=sflag, size = 0x4, scoped, tag = 'scoped memory for mlp_forward.1']
    %10 = vsyncpa [#allocation3], 0
    %11 = vsyncpa [#allocation5], 0
    // Predicated region
    $region2: #{mlp_forward.1} parent=1 // pred_check
      _
    $region3: #{mlp_forward.1} parent=1 // pred_check_branch
      %13 = sbr.rel (0) target = $region5
    $region4: #{mlp_forward.1} parent=1 // pred_region
      _
    $region5: #{mlp_forward.1} parent=1 // pred_fallthru
      _
    // Predicated region
    $region6: #{mlp_forward.1} parent=1 // pred_check
      _
    $region7: #{mlp_forward.1} parent=1 // pred_check_branch
      %15 = sbr.rel (0) target = $region9
    $region8: #{mlp_forward.1} parent=1 // pred_region
      %17 = vsyncadd [#allocation3], 0
      %s18 = sshll.u32 %s1, 4
      %s19 = int_to_ptr.hbm [resolvable:$true] %s18
      %s20 = sshll.u32 [#allocation2], 4
      %s21 = int_to_ptr.vmem [resolvable:$true] %s20
      %26 = dma.hbm_to_vmem [thread:$0]  %s19, 4096, %s21, [#allocation3], 256, 256, 16
    $region9: #{mlp_forward.1} parent=1 // pred_fallthru
      _
    // Predicated region
    $region10: #{mlp_forward.1} parent=1 // pred_check
      _
    $region11: #{mlp_forward.1} parent=1 // pred_check_branch
      %28 = sbr.rel (0) target = $region13
    $region12: #{mlp_forward.1} parent=1 // pred_region
      _
    $region13: #{mlp_forward.1} parent=1 // pred_fallthru
      _
    // Predicated region
    $region14: #{mlp_forward.1} parent=1 // pred_check
      _
    $region15: #{mlp_forward.1} parent=1 // pred_check_branch
      %30 = sbr.rel (0) target = $region17
    $region16: #{mlp_forward.1} parent=1 // pred_region
      %32 = vsyncadd [#allocation5], 0
      %s33 = sshll.u32 %s3, 4
      %s34 = int_to_ptr.hbm [resolvable:$true] %s33
      %s35 = sshll.u32 [#allocation4], 4
      %s36 = int_to_ptr.vmem [resolvable:$true] %s35
      %41 = dma.hbm_to_vmem [thread:$0]  %s34, 4096, %s36, [#allocation5], 64, 64, 4
    $region17: #{mlp_forward.1} parent=1 // pred_fallthru
      _
    // Predicated region
    $region18: #{mlp_forward.1} parent=1 // pred_check
      _
    $region19: #{mlp_forward.1} parent=1 // pred_check_branch
      %43 = sbr.rel (0) target = $region21
    $region20: #{mlp_forward.1} parent=1 // pred_region
      _
    $region21: #{mlp_forward.1} parent=1 // pred_fallthru
      _
    // Predicated region
    $region22: #{mlp_forward.1} parent=1 // pred_check
      _
    $region23: #{mlp_forward.1} parent=1 // pred_check_branch
      %45 = sbr.rel (0) target = $region25
    $region24: #{mlp_forward.1} parent=1 // pred_region
      %47 = dma.done [#allocation3], 4096
    $region25: #{mlp_forward.1} parent=1 // pred_fallthru
      _
    // Predicated region
    $region26: #{mlp_forward.1} parent=1 // pred_check
      _
    $region27: #{mlp_forward.1} parent=1 // pred_check_branch
      %49 = sbr.rel (0) target = $region29
    $region28: #{mlp_forward.1} parent=1 // pred_region
      %51 = dma.done [#allocation5], 4096
    $region29: #{mlp_forward.1} parent=1 // pred_fallthru
      _
    %v52 = vld [vmem:[%s0] sm:$0xf]
    %v53 = vld [vmem:[%s0 + $0x4] sm:$0xf]
    %v54 = vld [vmem:[%s0 + $0x8] sm:$0xf]
    %v55 = vld [vmem:[#allocation2] sm:$0xff]
    %v56 = vld [vmem:[#allocation2 + $0x8] sm:$0xff]
    %v57 = vld [vmem:[#allocation2 + $0x10] sm:$0xff]
    %v58 = vld [vmem:[#allocation2 + $0x18] sm:$0xff]
    %v59 = vld [vmem:[#allocation2 + $0x20] sm:$0xff]
    %v60 = vld [vmem:[#allocation2 + $0x28] sm:$0xff]
    %v61 = vld [vmem:[#allocation2 + $0x30] sm:$0xff]
    %v62 = vld [vmem:[#allocation2 + $0x38] sm:$0xff]
    %v63 = vld [vmem:[#allocation2 + $0x40] sm:$0xff]
    %v64 = vld [vmem:[#allocation2 + $0x48] sm:$0xff]
    %v65 = vld [vmem:[#allocation2 + $0x50] sm:$0xff]
    %v66 = vld [vmem:[#allocation2 + $0x58] sm:$0xff]
    %v67 = vld [vmem:[#allocation2 + $0x60] sm:$0xff]
    %v68 = vld [vmem:[#allocation2 + $0x68] sm:$0xff]
    %v69 = vld [vmem:[#allocation2 + $0x70] sm:$0xff]
    %v70 = vld [vmem:[#allocation2 + $0x78] sm:$0xff]
    %v71 = vld [vmem:[#allocation2 + $0x80] sm:$0xff]
    %v72 = vld [vmem:[#allocation2 + $0x88] sm:$0xff]
    %v73 = vld [vmem:[#allocation2 + $0x90] sm:$0xff]
    %v74 = vld [vmem:[#allocation2 + $0x98] sm:$0xff]
    %v75 = vld [vmem:[#allocation2 + $0xa0] sm:$0xff]
    %v76 = vld [vmem:[#allocation2 + $0xa8] sm:$0xff]
    %v77 = vld [vmem:[#allocation2 + $0xb0] sm:$0xff]
    %v78 = vld [vmem:[#allocation2 + $0xb8] sm:$0xff]
    %v79 = vld [vmem:[#allocation2 + $0xc0] sm:$0xff]
    %v80 = vld [vmem:[#allocation2 + $0xc8] sm:$0xff]
    %v81 = vld [vmem:[#allocation2 + $0xd0] sm:$0xff]
    %v82 = vld [vmem:[#allocation2 + $0xd8] sm:$0xff]
    %v83 = vld [vmem:[#allocation2 + $0xe0] sm:$0xff]
    %v84 = vld [vmem:[#allocation2 + $0xe8] sm:$0xff]
    %v85 = vld [vmem:[#allocation2 + $0xf0] sm:$0xff]
    %v86 = vld [vmem:[#allocation2 + $0xf8] sm:$0xff]
    %v87 = vld [vmem:[%s2] sm:$0xf]
    %v89 = vperm.slane %v87, 0
    %v90 = vperm.slane %v87, 1
    %v91 = vperm.slane %v87, 2
    %v92 = vperm.slane %v87, 3
    %v100 = vunpack.c.l.b16 %v52
    %v101 = vunpack.c.l.b16 %v53
    %v102 = vunpack.c.l.b16 %v54
    %v103 = vpack.c.b16 %v101, %v100
    %v104 = vpack.c.b16 %v102, %v102
    %v139 = vunpack.c.l.b16 %v55
    %v140 = vunpack.c.h.b16 %v55
    %v141 = vunpack.c.l.b16 %v56
    %v142 = vunpack.c.h.b16 %v56
    %v143 = vunpack.c.l.b16 %v57
    %v144 = vunpack.c.h.b16 %v57
    %v145 = vunpack.c.l.b16 %v58
    %v146 = vunpack.c.h.b16 %v58
    %v147 = vunpack.c.l.b16 %v59
    %v148 = vunpack.c.h.b16 %v59
    %v149 = vunpack.c.l.b16 %v60
    %v150 = vunpack.c.h.b16 %v60
    %v151 = vunpack.c.l.b16 %v61
    %v152 = vunpack.c.h.b16 %v61
    %v153 = vunpack.c.l.b16 %v62
    %v154 = vunpack.c.h.b16 %v62
    %v155 = vunpack.c.l.b16 %v63
    %v156 = vunpack.c.h.b16 %v63
    %v157 = vunpack.c.l.b16 %v64
    %v158 = vunpack.c.h.b16 %v64
    %v159 = vunpack.c.l.b16 %v65
    %v160 = vunpack.c.h.b16 %v65
    %v161 = vunpack.c.l.b16 %v66
    %v162 = vunpack.c.h.b16 %v66
    %v163 = vunpack.c.l.b16 %v67
    %v164 = vunpack.c.h.b16 %v67
    %v165 = vunpack.c.l.b16 %v68
    %v166 = vunpack.c.h.b16 %v68
    %v167 = vunpack.c.l.b16 %v69
    %v168 = vunpack.c.h.b16 %v69
    %v169 = vunpack.c.l.b16 %v70
    %v170 = vunpack.c.h.b16 %v70
    %v171 = vunpack.c.l.b16 %v71
    %v172 = vunpack.c.h.b16 %v71
    %v173 = vunpack.c.l.b16 %v72
    %v174 = vunpack.c.h.b16 %v72
    %v175 = vunpack.c.l.b16 %v73
    %v176 = vunpack.c.h.b16 %v73
    %v177 = vunpack.c.l.b16 %v74
    %v178 = vunpack.c.h.b16 %v74
    %v179 = vunpack.c.l.b16 %v75
    %v180 = vunpack.c.h.b16 %v75
    %v181 = vunpack.c.l.b16 %v76
    %v182 = vunpack.c.h.b16 %v76
    %v183 = vunpack.c.l.b16 %v77
    %v184 = vunpack.c.h.b16 %v77
    %v185 = vunpack.c.l.b16 %v78
    %v186 = vunpack.c.h.b16 %v78
    %v187 = vunpack.c.l.b16 %v79
    %v188 = vunpack.c.h.b16 %v79
    %v189 = vunpack.c.l.b16 %v80
    %v190 = vunpack.c.h.b16 %v80
    %v191 = vunpack.c.l.b16 %v81
    %v192 = vunpack.c.h.b16 %v81
    %v193 = vunpack.c.l.b16 %v82
    %v194 = vunpack.c.h.b16 %v82
    %v195 = vunpack.c.l.b16 %v83
    %v196 = vunpack.c.h.b16 %v83
    %v197 = vunpack.c.l.b16 %v84
    %v198 = vunpack.c.h.b16 %v84
    %v199 = vunpack.c.l.b16 %v85
    %v200 = vunpack.c.h.b16 %v85
    %v201 = vunpack.c.l.b16 %v86
    %v202 = vunpack.c.h.b16 %v86
    %v203 = vpack.c.b16 %v143, %v139
    %v204 = vpack.c.b16 %v144, %v140
    %v205 = vpack.c.b16 %v145, %v141
    %v206 = vpack.c.b16 %v146, %v142
    %v207 = vpack.c.b16 %v151, %v147
    %v208 = vpack.c.b16 %v152, %v148
    %v209 = vpack.c.b16 %v153, %v149
    %v210 = vpack.c.b16 %v154, %v150
    %v211 = vpack.c.b16 %v159, %v155
    %v212 = vpack.c.b16 %v160, %v156
    %v213 = vpack.c.b16 %v161, %v157
    %v214 = vpack.c.b16 %v162, %v158
    %v215 = vpack.c.b16 %v167, %v163
    %v216 = vpack.c.b16 %v168, %v164
    %v217 = vpack.c.b16 %v169, %v165
    %v218 = vpack.c.b16 %v170, %v166
    %v219 = vpack.c.b16 %v175, %v171
    %v220 = vpack.c.b16 %v176, %v172
    %v221 = vpack.c.b16 %v177, %v173
    %v222 = vpack.c.b16 %v178, %v174
    %v223 = vpack.c.b16 %v183, %v179
    %v224 = vpack.c.b16 %v184, %v180
    %v225 = vpack.c.b16 %v185, %v181
    %v226 = vpack.c.b16 %v186, %v182
    %v227 = vpack.c.b16 %v191, %v187
    %v228 = vpack.c.b16 %v192, %v188
    %v229 = vpack.c.b16 %v193, %v189
    %v230 = vpack.c.b16 %v194, %v190
    %v231 = vpack.c.b16 %v199, %v195
    %v232 = vpack.c.b16 %v200, %v196
    %v233 = vpack.c.b16 %v201, %v197
    %v234 = vpack.c.b16 %v202, %v198
    %267 = vmatpush.bf16.msra.mxu0 %v231
    %268 = vmatpush.bf16.msra.mxu0 %v227
    %269 = vmatpush.bf16.msra.mxu0 %v223
    %270 = vmatpush.bf16.msra.mxu0 %v219
    %271 = vmatpush.bf16.msra.mxu0 %v215
    %272 = vmatpush.bf16.msra.mxu0 %v211
    %273 = vmatpush.bf16.msra.mxu0 %v207
    %274 = vmatpush.bf16.msra.mxu0 %v203
    %275 = vmatmul.bf16.gmra.mxu0 %v103
    %v276 = vpop.f32.mrf.mxu0
    %v277 = vadd.f32 %v89, %v276
    %v278 = vpop.f32.mrf.mxu0
    %v279 = vadd.f32 %v89, %v278
    %280 = vmatmul.bf16.gmra.mxu0 %v104
    %v281 = vpop.f32.mrf.mxu0
    %v282 = vadd.f32 %v89, %v281
    %v283 = vpop.f32.mrf.mxu0
    %284 = vdwg.mxu0
    %285 = vmatpush.bf16.msra.mxu0 %v232
    %286 = vmatpush.bf16.msra.mxu0 %v228
    %287 = vmatpush.bf16.msra.mxu0 %v224
    %288 = vmatpush.bf16.msra.mxu0 %v220
    %289 = vmatpush.bf16.msra.mxu0 %v216
    %290 = vmatpush.bf16.msra.mxu0 %v212
    %291 = vmatpush.bf16.msra.mxu0 %v208
    %292 = vmatpush.bf16.msra.mxu0 %v204
    %293 = vmatmul.bf16.gmra.mxu0 %v103
    %v294 = vpop.f32.mrf.mxu0
    %v295 = vadd.f32 %v90, %v294
    %v296 = vpop.f32.mrf.mxu0
    %v297 = vadd.f32 %v90, %v296
    %298 = vmatmul.bf16.gmra.mxu0 %v104
    %v299 = vpop.f32.mrf.mxu0
    %v300 = vadd.f32 %v90, %v299
    %v301 = vpop.f32.mrf.mxu0
    %302 = vdwg.mxu0
    %303 = vmatpush.bf16.msra.mxu0 %v233
    %304 = vmatpush.bf16.msra.mxu0 %v229
    %305 = vmatpush.bf16.msra.mxu0 %v225
    %306 = vmatpush.bf16.msra.mxu0 %v221
    %307 = vmatpush.bf16.msra.mxu0 %v217
    %308 = vmatpush.bf16.msra.mxu0 %v213
    %309 = vmatpush.bf16.msra.mxu0 %v209
    %310 = vmatpush.bf16.msra.mxu0 %v205
    %311 = vmatmul.bf16.gmra.mxu0 %v103
    %v312 = vpop.f32.mrf.mxu0
    %v313 = vadd.f32 %v91, %v312
    %v314 = vpop.f32.mrf.mxu0
    %v315 = vadd.f32 %v91, %v314
    %316 = vmatmul.bf16.gmra.mxu0 %v104
    %v317 = vpop.f32.mrf.mxu0
    %v318 = vadd.f32 %v91, %v317
    %v319 = vpop.f32.mrf.mxu0
    %320 = vdwg.mxu0
    %321 = vmatpush.bf16.msra.mxu0 %v234
    %322 = vmatpush.bf16.msra.mxu0 %v230
    %323 = vmatpush.bf16.msra.mxu0 %v226
    %324 = vmatpush.bf16.msra.mxu0 %v222
    %325 = vmatpush.bf16.msra.mxu0 %v218
    %326 = vmatpush.bf16.msra.mxu0 %v214
    %327 = vmatpush.bf16.msra.mxu0 %v210
    %328 = vmatpush.bf16.msra.mxu0 %v206
    %329 = vmatmul.bf16.gmra.mxu0 %v103
    %v330 = vpop.f32.mrf.mxu0
    %v331 = vadd.f32 %v92, %v330
    %v332 = vpop.f32.mrf.mxu0
    %v333 = vadd.f32 %v92, %v332
    %334 = vmatmul.bf16.gmra.mxu0 %v104
    %v335 = vpop.f32.mrf.mxu0
    %v336 = vadd.f32 %v92, %v335
    %v337 = vpop.f32.mrf.mxu0
    %338 = vdwg.mxu0
    %v339 = vmul.f32 %v277, 0.5
    %v340 = vmul.f32 %v295, 0.5
    %v341 = vmul.f32 %v313, 0.5
    %v342 = vmul.f32 %v331, 0.5
    %v343 = vmul.f32 %v279, 0.5
    %v344 = vmul.f32 %v297, 0.5
    %v345 = vmul.f32 %v315, 0.5
    %v346 = vmul.f32 %v333, 0.5
    %v347 = vmul.f32 %v282, 0.5
    %v348 = vmul.f32 %v300, 0.5
    %v349 = vmul.f32 %v318, 0.5
    %v350 = vmul.f32 %v336, 0.5
    %v351 = vmul.f32 %v277, 0.70710677
    %v352 = vmul.f32 %v295, 0.70710677
    %v353 = vmul.f32 %v313, 0.70710677
    %v354 = vmul.f32 %v331, 0.70710677
    %v355 = vmul.f32 %v279, 0.70710677
    %v356 = vmul.f32 %v297, 0.70710677
    %v357 = vmul.f32 %v315, 0.70710677
    %v358 = vmul.f32 %v333, 0.70710677
    %v359 = vmul.f32 %v282, 0.70710677
    %v360 = vmul.f32 %v300, 0.70710677
    %v361 = vmul.f32 %v318, 0.70710677
    %v362 = vmul.f32 %v336, 0.70710677
    %v363 = vmul.f32 %v351, %v351
    %v364 = vmin.f32 16.0, %v363
    %v365 = vmul.f32 %v364, 2.1237322e-06
    %v366 = vadd.f32 %v365, 0.00028619796
    %v367 = vmul.f32 %v364, %v366
    %v368 = vadd.f32 %v367, 0.0036580483
    %v369 = vmul.f32 %v364, %v368
    %v370 = vadd.f32 %v369, 0.05243302
    %v371 = vmul.f32 %v364, %v370
    %v372 = vadd.f32 %v371, 0.18741608
    %v373 = vmul.f32 %v364, %v372
    %v374 = vadd.f32 %v373, 1.1283791
    %v375 = vmul.f32 %v351, %v374
    %v376 = vmul.f32 %v364, 3.8918573e-05
    %v377 = vadd.f32 %v376, 0.001143296
    %v378 = vmul.f32 %v364, %v377
    %v379 = vadd.f32 %v378, 0.014752088
    %v380 = vmul.f32 %v364, %v379
    %v381 = vadd.f32 %v380, 0.112945676
    %v382 = vmul.f32 %v364, %v381
    %v383 = vadd.f32 %v382, 0.4994258
    %v384 = vmul.f32 %v364, %v383
    %v385 = vadd.f32 %v384, 1.0
    %v386 = vrcp.pop %v385
    %v387 = vmul.f32 %v385, %v386
    %v388 = vsub.f32 1.0, %v387
    %v389 = vmul.f32 %v386, %v388
    %v390 = vadd.f32 %v386, %v389
    %vm391 = vweird.f32 %v385
    %vm392 = vweird.f32 %v386
    %vm393 = vmor %vm391, %vm392
    %v394 = vsel %vm393, %v386, %v390
    %v395 = vand.u32 2147483647, %v385
    %vm396 = vcmp.eq.f32.partialorder %v395, 8.507059e+37
    %v397 = vand.u32 %v385, 2147483648
    %v398 = vor.u32 1.1754944e-38, %v397
    %v399 = vsel %vm396, %v398, %v394
    %v400 = vmul.f32 %v375, %v399
    %v401 = vmin.f32 %v400, 1.0
    %v402 = vmax.f32 %v401, -1.0
    %v403 = vmul.f32 %v352, %v352
    %v404 = vmin.f32 16.0, %v403
    %v405 = vmul.f32 %v404, 2.1237322e-06
    %v406 = vadd.f32 %v405, 0.00028619796
    %v407 = vmul.f32 %v404, %v406
    %v408 = vadd.f32 %v407, 0.0036580483
    %v409 = vmul.f32 %v404, %v408
    %v410 = vadd.f32 %v409, 0.05243302
    %v411 = vmul.f32 %v404, %v410
    %v412 = vadd.f32 %v411, 0.18741608
    %v413 = vmul.f32 %v404, %v412
    %v414 = vadd.f32 %v413, 1.1283791
    %v415 = vmul.f32 %v352, %v414
    %v416 = vmul.f32 %v404, 3.8918573e-05
    %v417 = vadd.f32 %v416, 0.001143296
    %v418 = vmul.f32 %v404, %v417
    %v419 = vadd.f32 %v418, 0.014752088
    %v420 = vmul.f32 %v404, %v419
    %v421 = vadd.f32 %v420, 0.112945676
    %v422 = vmul.f32 %v404, %v421
    %v423 = vadd.f32 %v422, 0.4994258
    %v424 = vmul.f32 %v404, %v423
    %v425 = vadd.f32 %v424, 1.0
    %v426 = vrcp.pop %v425
    %v427 = vmul.f32 %v425, %v426
    %v428 = vsub.f32 1.0, %v427
    %v429 = vmul.f32 %v426, %v428
    %v430 = vadd.f32 %v426, %v429
    %vm431 = vweird.f32 %v425
    %vm432 = vweird.f32 %v426
    %vm433 = vmor %vm431, %vm432
    %v434 = vsel %vm433, %v426, %v430
    %v435 = vand.u32 2147483647, %v425
    %vm436 = vcmp.eq.f32.partialorder %v435, 8.507059e+37
    %v437 = vand.u32 %v425, 2147483648
    %v438 = vor.u32 1.1754944e-38, %v437
    %v439 = vsel %vm436, %v438, %v434
    %v440 = vmul.f32 %v415, %v439
    %v441 = vmin.f32 %v440, 1.0
    %v442 = vmax.f32 %v441, -1.0
    %v443 = vmul.f32 %v353, %v353
    %v444 = vmin.f32 16.0, %v443
    %v445 = vmul.f32 %v444, 2.1237322e-06
    %v446 = vadd.f32 %v445, 0.00028619796
    %v447 = vmul.f32 %v444, %v446
    %v448 = vadd.f32 %v447, 0.0036580483
    %v449 = vmul.f32 %v444, %v448
    %v450 = vadd.f32 %v449, 0.05243302
    %v451 = vmul.f32 %v444, %v450
    %v452 = vadd.f32 %v451, 0.18741608
    %v453 = vmul.f32 %v444, %v452
    %v454 = vadd.f32 %v453, 1.1283791
    %v455 = vmul.f32 %v353, %v454
    %v456 = vmul.f32 %v444, 3.8918573e-05
    %v457 = vadd.f32 %v456, 0.001143296
    %v458 = vmul.f32 %v444, %v457
    %v459 = vadd.f32 %v458, 0.014752088
    %v460 = vmul.f32 %v444, %v459
    %v461 = vadd.f32 %v460, 0.112945676
    %v462 = vmul.f32 %v444, %v461
    %v463 = vadd.f32 %v462, 0.4994258
    %v464 = vmul.f32 %v444, %v463
    %v465 = vadd.f32 %v464, 1.0
    %v466 = vrcp.pop %v465
    %v467 = vmul.f32 %v465, %v466
    %v468 = vsub.f32 1.0, %v467
    %v469 = vmul.f32 %v466, %v468
    %v470 = vadd.f32 %v466, %v469
    %vm471 = vweird.f32 %v465
    %vm472 = vweird.f32 %v466
    %vm473 = vmor %vm471, %vm472
    %v474 = vsel %vm473, %v466, %v470
    %v475 = vand.u32 2147483647, %v465
    %vm476 = vcmp.eq.f32.partialorder %v475, 8.507059e+37
    %v477 = vand.u32 %v465, 2147483648
    %v478 = vor.u32 1.1754944e-38, %v477
    %v479 = vsel %vm476, %v478, %v474
    %v480 = vmul.f32 %v455, %v479
    %v481 = vmin.f32 %v480, 1.0
    %v482 = vmax.f32 %v481, -1.0
    %v483 = vmul.f32 %v354, %v354
    %v484 = vmin.f32 16.0, %v483
    %v485 = vmul.f32 %v484, 2.1237322e-06
    %v486 = vadd.f32 %v485, 0.00028619796
    %v487 = vmul.f32 %v484, %v486
    %v488 = vadd.f32 %v487, 0.0036580483
    %v489 = vmul.f32 %v484, %v488
    %v490 = vadd.f32 %v489, 0.05243302
    %v491 = vmul.f32 %v484, %v490
    %v492 = vadd.f32 %v491, 0.18741608
    %v493 = vmul.f32 %v484, %v492
    %v494 = vadd.f32 %v493, 1.1283791
    %v495 = vmul.f32 %v354, %v494
    %v496 = vmul.f32 %v484, 3.8918573e-05
    %v497 = vadd.f32 %v496, 0.001143296
    %v498 = vmul.f32 %v484, %v497
    %v499 = vadd.f32 %v498, 0.014752088
    %v500 = vmul.f32 %v484, %v499
    %v501 = vadd.f32 %v500, 0.112945676
    %v502 = vmul.f32 %v484, %v501
    %v503 = vadd.f32 %v502, 0.4994258
    %v504 = vmul.f32 %v484, %v503
    %v505 = vadd.f32 %v504, 1.0
    %v506 = vrcp.pop %v505
    %v507 = vmul.f32 %v505, %v506
    %v508 = vsub.f32 1.0, %v507
    %v509 = vmul.f32 %v506, %v508
    %v510 = vadd.f32 %v506, %v509
    %vm511 = vweird.f32 %v505
    %vm512 = vweird.f32 %v506
    %vm513 = vmor %vm511, %vm512
    %v514 = vsel %vm513, %v506, %v510
    %v515 = vand.u32 2147483647, %v505
    %vm516 = vcmp.eq.f32.partialorder %v515, 8.507059e+37
    %v517 = vand.u32 %v505, 2147483648
    %v518 = vor.u32 1.1754944e-38, %v517
    %v519 = vsel %vm516, %v518, %v514
    %v520 = vmul.f32 %v495, %v519
    %v521 = vmin.f32 %v520, 1.0
    %v522 = vmax.f32 %v521, -1.0
    %v523 = vmul.f32 %v355, %v355
    %v524 = vmin.f32 16.0, %v523
    %v525 = vmul.f32 %v524, 2.1237322e-06
    %v526 = vadd.f32 %v525, 0.00028619796
    %v527 = vmul.f32 %v524, %v526
    %v528 = vadd.f32 %v527, 0.0036580483
    %v529 = vmul.f32 %v524, %v528
    %v530 = vadd.f32 %v529, 0.05243302
    %v531 = vmul.f32 %v524, %v530
    %v532 = vadd.f32 %v531, 0.18741608
    %v533 = vmul.f32 %v524, %v532
    %v534 = vadd.f32 %v533, 1.1283791
    %v535 = vmul.f32 %v355, %v534
    %v536 = vmul.f32 %v524, 3.8918573e-05
    %v537 = vadd.f32 %v536, 0.001143296
    %v538 = vmul.f32 %v524, %v537
    %v539 = vadd.f32 %v538, 0.014752088
    %v540 = vmul.f32 %v524, %v539
    %v541 = vadd.f32 %v540, 0.112945676
    %v542 = vmul.f32 %v524, %v541
    %v543 = vadd.f32 %v542, 0.4994258
    %v544 = vmul.f32 %v524, %v543
    %v545 = vadd.f32 %v544, 1.0
    %v546 = vrcp.pop %v545
    %v547 = vmul.f32 %v545, %v546
    %v548 = vsub.f32 1.0, %v547
    %v549 = vmul.f32 %v546, %v548
    %v550 = vadd.f32 %v546, %v549
    %vm551 = vweird.f32 %v545
    %vm552 = vweird.f32 %v546
    %vm553 = vmor %vm551, %vm552
    %v554 = vsel %vm553, %v546, %v550
    %v555 = vand.u32 2147483647, %v545
    %vm556 = vcmp.eq.f32.partialorder %v555, 8.507059e+37
    %v557 = vand.u32 %v545, 2147483648
    %v558 = vor.u32 1.1754944e-38, %v557
    %v559 = vsel %vm556, %v558, %v554
    %v560 = vmul.f32 %v535, %v559
    %v561 = vmin.f32 %v560, 1.0
    %v562 = vmax.f32 %v561, -1.0
    %v563 = vmul.f32 %v356, %v356
    %v564 = vmin.f32 16.0, %v563
    %v565 = vmul.f32 %v564, 2.1237322e-06
    %v566 = vadd.f32 %v565, 0.00028619796
    %v567 = vmul.f32 %v564, %v566
    %v568 = vadd.f32 %v567, 0.0036580483
    %v569 = vmul.f32 %v564, %v568
    %v570 = vadd.f32 %v569, 0.05243302
    %v571 = vmul.f32 %v564, %v570
    %v572 = vadd.f32 %v571, 0.18741608
    %v573 = vmul.f32 %v564, %v572
    %v574 = vadd.f32 %v573, 1.1283791
    %v575 = vmul.f32 %v356, %v574
    %v576 = vmul.f32 %v564, 3.8918573e-05
    %v577 = vadd.f32 %v576, 0.001143296
    %v578 = vmul.f32 %v564, %v577
    %v579 = vadd.f32 %v578, 0.014752088
    %v580 = vmul.f32 %v564, %v579
    %v581 = vadd.f32 %v580, 0.112945676
    %v582 = vmul.f32 %v564, %v581
    %v583 = vadd.f32 %v582, 0.4994258
    %v584 = vmul.f32 %v564, %v583
    %v585 = vadd.f32 %v584, 1.0
    %v586 = vrcp.pop %v585
    %v587 = vmul.f32 %v585, %v586
    %v588 = vsub.f32 1.0, %v587
    %v589 = vmul.f32 %v586, %v588
    %v590 = vadd.f32 %v586, %v589
    %vm591 = vweird.f32 %v585
    %vm592 = vweird.f32 %v586
    %vm593 = vmor %vm591, %vm592
    %v594 = vsel %vm593, %v586, %v590
    %v595 = vand.u32 2147483647, %v585
    %vm596 = vcmp.eq.f32.partialorder %v595, 8.507059e+37
    %v597 = vand.u32 %v585, 2147483648
    %v598 = vor.u32 1.1754944e-38, %v597
    %v599 = vsel %vm596, %v598, %v594
    %v600 = vmul.f32 %v575, %v599
    %v601 = vmin.f32 %v600, 1.0
    %v602 = vmax.f32 %v601, -1.0
    %v603 = vmul.f32 %v357, %v357
    %v604 = vmin.f32 16.0, %v603
    %v605 = vmul.f32 %v604, 2.1237322e-06
    %v606 = vadd.f32 %v605, 0.00028619796
    %v607 = vmul.f32 %v604, %v606
    %v608 = vadd.f32 %v607, 0.0036580483
    %v609 = vmul.f32 %v604, %v608
    %v610 = vadd.f32 %v609, 0.05243302
    %v611 = vmul.f32 %v604, %v610
    %v612 = vadd.f32 %v611, 0.18741608
    %v613 = vmul.f32 %v604, %v612
    %v614 = vadd.f32 %v613, 1.1283791
    %v615 = vmul.f32 %v357, %v614
    %v616 = vmul.f32 %v604, 3.8918573e-05
    %v617 = vadd.f32 %v616, 0.001143296
    %v618 = vmul.f32 %v604, %v617
    %v619 = vadd.f32 %v618, 0.014752088
    %v620 = vmul.f32 %v604, %v619
    %v621 = vadd.f32 %v620, 0.112945676
    %v622 = vmul.f32 %v604, %v621
    %v623 = vadd.f32 %v622, 0.4994258
    %v624 = vmul.f32 %v604, %v623
    %v625 = vadd.f32 %v624, 1.0
    %v626 = vrcp.pop %v625
    %v627 = vmul.f32 %v625, %v626
    %v628 = vsub.f32 1.0, %v627
    %v629 = vmul.f32 %v626, %v628
    %v630 = vadd.f32 %v626, %v629
    %vm631 = vweird.f32 %v625
    %vm632 = vweird.f32 %v626
    %vm633 = vmor %vm631, %vm632
    %v634 = vsel %vm633, %v626, %v630
    %v635 = vand.u32 2147483647, %v625
    %vm636 = vcmp.eq.f32.partialorder %v635, 8.507059e+37
    %v637 = vand.u32 %v625, 2147483648
    %v638 = vor.u32 1.1754944e-38, %v637
    %v639 = vsel %vm636, %v638, %v634
    %v640 = vmul.f32 %v615, %v639
    %v641 = vmin.f32 %v640, 1.0
    %v642 = vmax.f32 %v641, -1.0
    %v643 = vmul.f32 %v358, %v358
    %v644 = vmin.f32 16.0, %v643
    %v645 = vmul.f32 %v644, 2.1237322e-06
    %v646 = vadd.f32 %v645, 0.00028619796
    %v647 = vmul.f32 %v644, %v646
    %v648 = vadd.f32 %v647, 0.0036580483
    %v649 = vmul.f32 %v644, %v648
    %v650 = vadd.f32 %v649, 0.05243302
    %v651 = vmul.f32 %v644, %v650
    %v652 = vadd.f32 %v651, 0.18741608
    %v653 = vmul.f32 %v644, %v652
    %v654 = vadd.f32 %v653, 1.1283791
    %v655 = vmul.f32 %v358, %v654
    %v656 = vmul.f32 %v644, 3.8918573e-05
    %v657 = vadd.f32 %v656, 0.001143296
    %v658 = vmul.f32 %v644, %v657
    %v659 = vadd.f32 %v658, 0.014752088
    %v660 = vmul.f32 %v644, %v659
    %v661 = vadd.f32 %v660, 0.112945676
    %v662 = vmul.f32 %v644, %v661
    %v663 = vadd.f32 %v662, 0.4994258
    %v664 = vmul.f32 %v644, %v663
    %v665 = vadd.f32 %v664, 1.0
    %v666 = vrcp.pop %v665
    %v667 = vmul.f32 %v665, %v666
    %v668 = vsub.f32 1.0, %v667
    %v669 = vmul.f32 %v666, %v668
    %v670 = vadd.f32 %v666, %v669
    %vm671 = vweird.f32 %v665
    %vm672 = vweird.f32 %v666
    %vm673 = vmor %vm671, %vm672
    %v674 = vsel %vm673, %v666, %v670
    %v675 = vand.u32 2147483647, %v665
    %vm676 = vcmp.eq.f32.partialorder %v675, 8.507059e+37
    %v677 = vand.u32 %v665, 2147483648
    %v678 = vor.u32 1.1754944e-38, %v677
    %v679 = vsel %vm676, %v678, %v674
    %v680 = vmul.f32 %v655, %v679
    %v681 = vmin.f32 %v680, 1.0
    %v682 = vmax.f32 %v681, -1.0
    %v683 = vmul.f32 %v359, %v359
    %v684 = vmin.f32 16.0, %v683
    %v685 = vmul.f32 %v684, 2.1237322e-06
    %v686 = vadd.f32 %v685, 0.00028619796
    %v687 = vmul.f32 %v684, %v686
    %v688 = vadd.f32 %v687, 0.0036580483
    %v689 = vmul.f32 %v684, %v688
    %v690 = vadd.f32 %v689, 0.05243302
    %v691 = vmul.f32 %v684, %v690
    %v692 = vadd.f32 %v691, 0.18741608
    %v693 = vmul.f32 %v684, %v692
    %v694 = vadd.f32 %v693, 1.1283791
    %v695 = vmul.f32 %v359, %v694
    %v696 = vmul.f32 %v684, 3.8918573e-05
    %v697 = vadd.f32 %v696, 0.001143296
    %v698 = vmul.f32 %v684, %v697
    %v699 = vadd.f32 %v698, 0.014752088
    %v700 = vmul.f32 %v684, %v699
    %v701 = vadd.f32 %v700, 0.112945676
    %v702 = vmul.f32 %v684, %v701
    %v703 = vadd.f32 %v702, 0.4994258
    %v704 = vmul.f32 %v684, %v703
    %v705 = vadd.f32 %v704, 1.0
    %v706 = vrcp.pop %v705
    %v707 = vmul.f32 %v705, %v706
    %v708 = vsub.f32 1.0, %v707
    %v709 = vmul.f32 %v706, %v708
    %v710 = vadd.f32 %v706, %v709
    %vm711 = vweird.f32 %v705
    %vm712 = vweird.f32 %v706
    %vm713 = vmor %vm711, %vm712
    %v714 = vsel %vm713, %v706, %v710
    %v715 = vand.u32 2147483647, %v705
    %vm716 = vcmp.eq.f32.partialorder %v715, 8.507059e+37
    %v717 = vand.u32 %v705, 2147483648
    %v718 = vor.u32 1.1754944e-38, %v717
    %v719 = vsel %vm716, %v718, %v714
    %v720 = vmul.f32 %v695, %v719
    %v721 = vmin.f32 %v720, 1.0
    %v722 = vmax.f32 %v721, -1.0
    %v723 = vmul.f32 %v360, %v360
    %v724 = vmin.f32 16.0, %v723
    %v725 = vmul.f32 %v724, 2.1237322e-06
    %v726 = vadd.f32 %v725, 0.00028619796
    %v727 = vmul.f32 %v724, %v726
    %v728 = vadd.f32 %v727, 0.0036580483
    %v729 = vmul.f32 %v724, %v728
    %v730 = vadd.f32 %v729, 0.05243302
    %v731 = vmul.f32 %v724, %v730
    %v732 = vadd.f32 %v731, 0.18741608
    %v733 = vmul.f32 %v724, %v732
    %v734 = vadd.f32 %v733, 1.1283791
    %v735 = vmul.f32 %v360, %v734
    %v736 = vmul.f32 %v724, 3.8918573e-05
    %v737 = vadd.f32 %v736, 0.001143296
    %v738 = vmul.f32 %v724, %v737
    %v739 = vadd.f32 %v738, 0.014752088
    %v740 = vmul.f32 %v724, %v739
    %v741 = vadd.f32 %v740, 0.112945676
    %v742 = vmul.f32 %v724, %v741
    %v743 = vadd.f32 %v742, 0.4994258
    %v744 = vmul.f32 %v724, %v743
    %v745 = vadd.f32 %v744, 1.0
    %v746 = vrcp.pop %v745
    %v747 = vmul.f32 %v745, %v746
    %v748 = vsub.f32 1.0, %v747
    %v749 = vmul.f32 %v746, %v748
    %v750 = vadd.f32 %v746, %v749
    %vm751 = vweird.f32 %v745
    %vm752 = vweird.f32 %v746
    %vm753 = vmor %vm751, %vm752
    %v754 = vsel %vm753, %v746, %v750
    %v755 = vand.u32 2147483647, %v745
    %vm756 = vcmp.eq.f32.partialorder %v755, 8.507059e+37
    %v757 = vand.u32 %v745, 2147483648
    %v758 = vor.u32 1.1754944e-38, %v757
    %v759 = vsel %vm756, %v758, %v754
    %v760 = vmul.f32 %v735, %v759
    %v761 = vmin.f32 %v760, 1.0
    %v762 = vmax.f32 %v761, -1.0
    %v763 = vmul.f32 %v361, %v361
    %v764 = vmin.f32 16.0, %v763
    %v765 = vmul.f32 %v764, 2.1237322e-06
    %v766 = vadd.f32 %v765, 0.00028619796
    %v767 = vmul.f32 %v764, %v766
    %v768 = vadd.f32 %v767, 0.0036580483
    %v769 = vmul.f32 %v764, %v768
    %v770 = vadd.f32 %v769, 0.05243302
    %v771 = vmul.f32 %v764, %v770
    %v772 = vadd.f32 %v771, 0.18741608
    %v773 = vmul.f32 %v764, %v772
    %v774 = vadd.f32 %v773, 1.1283791
    %v775 = vmul.f32 %v361, %v774
    %v776 = vmul.f32 %v764, 3.8918573e-05
    %v777 = vadd.f32 %v776, 0.001143296
    %v778 = vmul.f32 %v764, %v777
    %v779 = vadd.f32 %v778, 0.014752088
    %v780 = vmul.f32 %v764, %v779
    %v781 = vadd.f32 %v780, 0.112945676
    %v782 = vmul.f32 %v764, %v781
    %v783 = vadd.f32 %v782, 0.4994258
    %v784 = vmul.f32 %v764, %v783
    %v785 = vadd.f32 %v784, 1.0
    %v786 = vrcp.pop %v785
    %v787 = vmul.f32 %v785, %v786
    %v788 = vsub.f32 1.0, %v787
    %v789 = vmul.f32 %v786, %v788
    %v790 = vadd.f32 %v786, %v789
    %vm791 = vweird.f32 %v785
    %vm792 = vweird.f32 %v786
    %vm793 = vmor %vm791, %vm792
    %v794 = vsel %vm793, %v786, %v790
    %v795 = vand.u32 2147483647, %v785
    %vm796 = vcmp.eq.f32.partialorder %v795, 8.507059e+37
    %v797 = vand.u32 %v785, 2147483648
    %v798 = vor.u32 1.1754944e-38, %v797
    %v799 = vsel %vm796, %v798, %v794
    %v800 = vmul.f32 %v775, %v799
    %v801 = vmin.f32 %v800, 1.0
    %v802 = vmax.f32 %v801, -1.0
    %v803 = vmul.f32 %v362, %v362
    %v804 = vmin.f32 16.0, %v803
    %v805 = vmul.f32 %v804, 2.1237322e-06
    %v806 = vadd.f32 %v805, 0.00028619796
    %v807 = vmul.f32 %v804, %v806
    %v808 = vadd.f32 %v807, 0.0036580483
    %v809 = vmul.f32 %v804, %v808
    %v810 = vadd.f32 %v809, 0.05243302
    %v811 = vmul.f32 %v804, %v810
    %v812 = vadd.f32 %v811, 0.18741608
    %v813 = vmul.f32 %v804, %v812
    %v814 = vadd.f32 %v813, 1.1283791
    %v815 = vmul.f32 %v362, %v814
    %v816 = vmul.f32 %v804, 3.8918573e-05
    %v817 = vadd.f32 %v816, 0.001143296
    %v818 = vmul.f32 %v804, %v817
    %v819 = vadd.f32 %v818, 0.014752088
    %v820 = vmul.f32 %v804, %v819
    %v821 = vadd.f32 %v820, 0.112945676
    %v822 = vmul.f32 %v804, %v821
    %v823 = vadd.f32 %v822, 0.4994258
    %v824 = vmul.f32 %v804, %v823
    %v825 = vadd.f32 %v824, 1.0
    %v826 = vrcp.pop %v825
    %v827 = vmul.f32 %v825, %v826
    %v828 = vsub.f32 1.0, %v827
    %v829 = vmul.f32 %v826, %v828
    %v830 = vadd.f32 %v826, %v829
    %vm831 = vweird.f32 %v825
    %vm832 = vweird.f32 %v826
    %vm833 = vmor %vm831, %vm832
    %v834 = vsel %vm833, %v826, %v830
    %v835 = vand.u32 2147483647, %v825
    %vm836 = vcmp.eq.f32.partialorder %v835, 8.507059e+37
    %v837 = vand.u32 %v825, 2147483648
    %v838 = vor.u32 1.1754944e-38, %v837
    %v839 = vsel %vm836, %v838, %v834
    %v840 = vmul.f32 %v815, %v839
    %v841 = vmin.f32 %v840, 1.0
    %v842 = vmax.f32 %v841, -1.0
    %v843 = vadd.f32 %v402, 1.0
    %v844 = vadd.f32 %v442, 1.0
    %v845 = vadd.f32 %v482, 1.0
    %v846 = vadd.f32 %v522, 1.0
    %v847 = vadd.f32 %v562, 1.0
    %v848 = vadd.f32 %v602, 1.0
    %v849 = vadd.f32 %v642, 1.0
    %v850 = vadd.f32 %v682, 1.0
    %v851 = vadd.f32 %v722, 1.0
    %v852 = vadd.f32 %v762, 1.0
    %v853 = vadd.f32 %v802, 1.0
    %v854 = vadd.f32 %v842, 1.0
    %v855 = vmul.f32 %v339, %v843
    %v856 = vmul.f32 %v340, %v844
    %v857 = vmul.f32 %v341, %v845
    %v858 = vmul.f32 %v342, %v846
    %v859 = vmul.f32 %v343, %v847
    %v860 = vmul.f32 %v344, %v848
    %v861 = vmul.f32 %v345, %v849
    %v862 = vmul.f32 %v346, %v850
    %v863 = vmul.f32 %v347, %v851
    %v864 = vmul.f32 %v348, %v852
    %v865 = vmul.f32 %v349, %v853
    %v866 = vmul.f32 %v350, %v854
    %v867 = vpack.c.bf16 %v859, %v855
    %v868 = vpack.c.bf16 %v860, %v856
    %v869 = vpack.c.bf16 %v861, %v857
    %v870 = vpack.c.bf16 %v862, %v858
    %v871 = vpack.c.bf16 %v863, %v863
    %v872 = vpack.c.bf16 %v864, %v864
    %v873 = vpack.c.bf16 %v865, %v865
    %v874 = vpack.c.bf16 %v866, %v866
    %v875 = vld [vmem:[#allocation4] sm:$0xf]
    %v876 = vld [vmem:[#allocation4 + $0x4] sm:$0xf]
    %v877 = vld [vmem:[#allocation4 + $0x8] sm:$0xf]
    %v878 = vld [vmem:[#allocation4 + $0xc] sm:$0xf]
    %v879 = vld [vmem:[#allocation4 + $0x10] sm:$0xf]
    %v880 = vld [vmem:[#allocation4 + $0x14] sm:$0xf]
    %v881 = vld [vmem:[#allocation4 + $0x18] sm:$0xf]
    %v882 = vld [vmem:[#allocation4 + $0x1c] sm:$0xf]
    %v883 = vld [vmem:[#allocation4 + $0x20] sm:$0xf]
    %v884 = vld [vmem:[#allocation4 + $0x24] sm:$0xf]
    %v885 = vld [vmem:[#allocation4 + $0x28] sm:$0xf]
    %v886 = vld [vmem:[#allocation4 + $0x2c] sm:$0xf]
    %v887 = vld [vmem:[#allocation4 + $0x30] sm:$0xf]
    %v888 = vld [vmem:[#allocation4 + $0x34] sm:$0xf]
    %v889 = vld [vmem:[#allocation4 + $0x38] sm:$0xf]
    %v890 = vld [vmem:[#allocation4 + $0x3c] sm:$0xf]
    %v891 = vld [vmem:[#allocation4 + $0x40] sm:$0xf]
    %v892 = vld [vmem:[#allocation4 + $0x44] sm:$0xf]
    %v893 = vld [vmem:[#allocation4 + $0x48] sm:$0xf]
    %v894 = vld [vmem:[#allocation4 + $0x4c] sm:$0xf]
    %v895 = vld [vmem:[#allocation4 + $0x50] sm:$0xf]
    %v896 = vld [vmem:[#allocation4 + $0x54] sm:$0xf]
    %v897 = vld [vmem:[#allocation4 + $0x58] sm:$0xf]
    %v898 = vld [vmem:[#allocation4 + $0x5c] sm:$0xf]
    %v899 = vld [vmem:[#allocation4 + $0x60] sm:$0xf]
    %v900 = vld [vmem:[#allocation4 + $0x64] sm:$0xf]
    %v901 = vld [vmem:[#allocation4 + $0x68] sm:$0xf]
    %v902 = vld [vmem:[#allocation4 + $0x6c] sm:$0xf]
    %v903 = vld [vmem:[#allocation4 + $0x70] sm:$0xf]
    %v904 = vld [vmem:[#allocation4 + $0x74] sm:$0xf]
    %v905 = vld [vmem:[#allocation4 + $0x78] sm:$0xf]
    %v906 = vld [vmem:[#allocation4 + $0x7c] sm:$0xf]
    %v907 = vld [vmem:[#allocation4 + $0x80] sm:$0xf]
    %v908 = vld [vmem:[#allocation4 + $0x84] sm:$0xf]
    %v909 = vld [vmem:[#allocation4 + $0x88] sm:$0xf]
    %v910 = vld [vmem:[#allocation4 + $0x8c] sm:$0xf]
    %v911 = vld [vmem:[#allocation4 + $0x90] sm:$0xf]
    %v912 = vld [vmem:[#allocation4 + $0x94] sm:$0xf]
    %v913 = vld [vmem:[#allocation4 + $0x98] sm:$0xf]
    %v914 = vld [vmem:[#allocation4 + $0x9c] sm:$0xf]
    %v915 = vld [vmem:[#allocation4 + $0xa0] sm:$0xf]
    %v916 = vld [vmem:[#allocation4 + $0xa4] sm:$0xf]
    %v917 = vld [vmem:[#allocation4 + $0xa8] sm:$0xf]
    %v918 = vld [vmem:[#allocation4 + $0xac] sm:$0xf]
    %v919 = vld [vmem:[#allocation4 + $0xb0] sm:$0xf]
    %v920 = vld [vmem:[#allocation4 + $0xb4] sm:$0xf]
    %v921 = vld [vmem:[#allocation4 + $0xb8] sm:$0xf]
    %v922 = vld [vmem:[#allocation4 + $0xbc] sm:$0xf]
    %v923 = vld [vmem:[#allocation4 + $0xc0] sm:$0xf]
    %v924 = vld [vmem:[#allocation4 + $0xc4] sm:$0xf]
    %v925 = vld [vmem:[#allocation4 + $0xc8] sm:$0xf]
    %v926 = vld [vmem:[#allocation4 + $0xcc] sm:$0xf]
    %v927 = vld [vmem:[#allocation4 + $0xd0] sm:$0xf]
    %v928 = vld [vmem:[#allocation4 + $0xd4] sm:$0xf]
    %v929 = vld [vmem:[#allocation4 + $0xd8] sm:$0xf]
    %v930 = vld [vmem:[#allocation4 + $0xdc] sm:$0xf]
    %v931 = vld [vmem:[#allocation4 + $0xe0] sm:$0xf]
    %v932 = vld [vmem:[#allocation4 + $0xe4] sm:$0xf]
    %v933 = vld [vmem:[#allocation4 + $0xe8] sm:$0xf]
    %v934 = vld [vmem:[#allocation4 + $0xec] sm:$0xf]
    %v935 = vld [vmem:[#allocation4 + $0xf0] sm:$0xf]
    %v936 = vld [vmem:[#allocation4 + $0xf4] sm:$0xf]
    %v937 = vld [vmem:[#allocation4 + $0xf8] sm:$0xf]
    %v938 = vld [vmem:[#allocation4 + $0xfc] sm:$0xf]
    %v939 = vld [vmem:[%s4] sm:$0x1]
    %v941 = vperm.slane %v939, 0
    %v1007 = vunpack.c.l.b16 %v875
    %v1008 = vunpack.c.l.b16 %v876
    %v1009 = vunpack.c.l.b16 %v877
    %v1010 = vunpack.c.l.b16 %v878
    %v1011 = vunpack.c.l.b16 %v879
    %v1012 = vunpack.c.l.b16 %v880
    %v1013 = vunpack.c.l.b16 %v881
    %v1014 = vunpack.c.l.b16 %v882
    %v1015 = vunpack.c.l.b16 %v883
    %v1016 = vunpack.c.l.b16 %v884
    %v1017 = vunpack.c.l.b16 %v885
    %v1018 = vunpack.c.l.b16 %v886
    %v1019 = vunpack.c.l.b16 %v887
    %v1020 = vunpack.c.l.b16 %v888
    %v1021 = vunpack.c.l.b16 %v889
    %v1022 = vunpack.c.l.b16 %v890
    %v1023 = vunpack.c.l.b16 %v891
    %v1024 = vunpack.c.l.b16 %v892
    %v1025 = vunpack.c.l.b16 %v893
    %v1026 = vunpack.c.l.b16 %v894
    %v1027 = vunpack.c.l.b16 %v895
    %v1028 = vunpack.c.l.b16 %v896
    %v1029 = vunpack.c.l.b16 %v897
    %v1030 = vunpack.c.l.b16 %v898
    %v1031 = vunpack.c.l.b16 %v899
    %v1032 = vunpack.c.l.b16 %v900
    %v1033 = vunpack.c.l.b16 %v901
    %v1034 = vunpack.c.l.b16 %v902
    %v1035 = vunpack.c.l.b16 %v903
    %v1036 = vunpack.c.l.b16 %v904
    %v1037 = vunpack.c.l.b16 %v905
    %v1038 = vunpack.c.l.b16 %v906
    %v1039 = vunpack.c.l.b16 %v907
    %v1040 = vunpack.c.l.b16 %v908
    %v1041 = vunpack.c.l.b16 %v909
    %v1042 = vunpack.c.l.b16 %v910
    %v1043 = vunpack.c.l.b16 %v911
    %v1044 = vunpack.c.l.b16 %v912
    %v1045 = vunpack.c.l.b16 %v913
    %v1046 = vunpack.c.l.b16 %v914
    %v1047 = vunpack.c.l.b16 %v915
    %v1048 = vunpack.c.l.b16 %v916
    %v1049 = vunpack.c.l.b16 %v917
    %v1050 = vunpack.c.l.b16 %v918
    %v1051 = vunpack.c.l.b16 %v919
    %v1052 = vunpack.c.l.b16 %v920
    %v1053 = vunpack.c.l.b16 %v921
    %v1054 = vunpack.c.l.b16 %v922
    %v1055 = vunpack.c.l.b16 %v923
    %v1056 = vunpack.c.l.b16 %v924
    %v1057 = vunpack.c.l.b16 %v925
    %v1058 = vunpack.c.l.b16 %v926
    %v1059 = vunpack.c.l.b16 %v927
    %v1060 = vunpack.c.l.b16 %v928
    %v1061 = vunpack.c.l.b16 %v929
    %v1062 = vunpack.c.l.b16 %v930
    %v1063 = vunpack.c.l.b16 %v931
    %v1064 = vunpack.c.l.b16 %v932
    %v1065 = vunpack.c.l.b16 %v933
    %v1066 = vunpack.c.l.b16 %v934
    %v1067 = vunpack.c.l.b16 %v935
    %v1068 = vunpack.c.l.b16 %v936
    %v1069 = vunpack.c.l.b16 %v937
    %v1070 = vunpack.c.l.b16 %v938
    %v1071 = vpack.c.b16 %v1008, %v1007
    %v1072 = vpack.c.b16 %v1010, %v1009
    %v1073 = vpack.c.b16 %v1012, %v1011
    %v1074 = vpack.c.b16 %v1014, %v1013
    %v1075 = vpack.c.b16 %v1016, %v1015
    %v1076 = vpack.c.b16 %v1018, %v1017
    %v1077 = vpack.c.b16 %v1020, %v1019
    %v1078 = vpack.c.b16 %v1022, %v1021
    %v1079 = vpack.c.b16 %v1024, %v1023
    %v1080 = vpack.c.b16 %v1026, %v1025
    %v1081 = vpack.c.b16 %v1028, %v1027
    %v1082 = vpack.c.b16 %v1030, %v1029
    %v1083 = vpack.c.b16 %v1032, %v1031
    %v1084 = vpack.c.b16 %v1034, %v1033
    %v1085 = vpack.c.b16 %v1036, %v1035
    %v1086 = vpack.c.b16 %v1038, %v1037
    %v1087 = vpack.c.b16 %v1040, %v1039
    %v1088 = vpack.c.b16 %v1042, %v1041
    %v1089 = vpack.c.b16 %v1044, %v1043
    %v1090 = vpack.c.b16 %v1046, %v1045
    %v1091 = vpack.c.b16 %v1048, %v1047
    %v1092 = vpack.c.b16 %v1050, %v1049
    %v1093 = vpack.c.b16 %v1052, %v1051
    %v1094 = vpack.c.b16 %v1054, %v1053
    %v1095 = vpack.c.b16 %v1056, %v1055
    %v1096 = vpack.c.b16 %v1058, %v1057
    %v1097 = vpack.c.b16 %v1060, %v1059
    %v1098 = vpack.c.b16 %v1062, %v1061
    %v1099 = vpack.c.b16 %v1064, %v1063
    %v1100 = vpack.c.b16 %v1066, %v1065
    %v1101 = vpack.c.b16 %v1068, %v1067
    %v1102 = vpack.c.b16 %v1070, %v1069
    %1135 = vmatpush.bf16.msra.mxu0 %v1078
    %1136 = vmatpush.bf16.msra.mxu0 %v1077
    %1137 = vmatpush.bf16.msra.mxu0 %v1076
    %1138 = vmatpush.bf16.msra.mxu0 %v1075
    %1139 = vmatpush.bf16.msra.mxu0 %v1074
    %1140 = vmatpush.bf16.msra.mxu0 %v1073
    %1141 = vmatpush.bf16.msra.mxu0 %v1072
    %1142 = vmatpush.bf16.msra.mxu0 %v1071
    %1143 = vmatmul.bf16.gmra.mxu0 %v867
    %v1144 = vpop.f32.mrf.mxu0
    %v1145 = vadd.f32 %v941, %v1144
    %v1146 = vpop.f32.mrf.mxu0
    %v1147 = vadd.f32 %v941, %v1146
    %1148 = vmatmul.bf16.gmra.mxu0 %v871
    %v1149 = vpop.f32.mrf.mxu0
    %v1150 = vadd.f32 %v941, %v1149
    %v1151 = vpop.f32.mrf.mxu0
    %1152 = vdwg.mxu0
    %1153 = vmatpush.bf16.msra.mxu0 %v1086
    %1154 = vmatpush.bf16.msra.mxu0 %v1085
    %1155 = vmatpush.bf16.msra.mxu0 %v1084
    %1156 = vmatpush.bf16.msra.mxu0 %v1083
    %1157 = vmatpush.bf16.msra.mxu0 %v1082
    %1158 = vmatpush.bf16.msra.mxu0 %v1081
    %1159 = vmatpush.bf16.msra.mxu0 %v1080
    %1160 = vmatpush.bf16.msra.mxu0 %v1079
    %1161 = vmatmul.bf16.gmra.mxu0 %v868
    %v1162 = vpop.f32.mrf.mxu0
    %v1163 = vadd.f32 %v1145, %v1162
    %v1164 = vpop.f32.mrf.mxu0
    %v1165 = vadd.f32 %v1147, %v1164
    %1166 = vmatmul.bf16.gmra.mxu0 %v872
    %v1167 = vpop.f32.mrf.mxu0
    %v1168 = vadd.f32 %v1150, %v1167
    %v1169 = vpop.f32.mrf.mxu0
    %1170 = vdwg.mxu0
    %1171 = vmatpush.bf16.msra.mxu0 %v1094
    %1172 = vmatpush.bf16.msra.mxu0 %v1093
    %1173 = vmatpush.bf16.msra.mxu0 %v1092
    %1174 = vmatpush.bf16.msra.mxu0 %v1091
    %1175 = vmatpush.bf16.msra.mxu0 %v1090
    %1176 = vmatpush.bf16.msra.mxu0 %v1089
    %1177 = vmatpush.bf16.msra.mxu0 %v1088
    %1178 = vmatpush.bf16.msra.mxu0 %v1087
    %1179 = vmatmul.bf16.gmra.mxu0 %v869
    %v1180 = vpop.f32.mrf.mxu0
    %v1181 = vadd.f32 %v1163, %v1180
    %v1182 = vpop.f32.mrf.mxu0
    %v1183 = vadd.f32 %v1165, %v1182
    %1184 = vmatmul.bf16.gmra.mxu0 %v873
    %v1185 = vpop.f32.mrf.mxu0
    %v1186 = vadd.f32 %v1168, %v1185
    %v1187 = vpop.f32.mrf.mxu0
    %1188 = vdwg.mxu0
    %1189 = vmatpush.bf16.msra.mxu0 %v1102
    %1190 = vmatpush.bf16.msra.mxu0 %v1101
    %1191 = vmatpush.bf16.msra.mxu0 %v1100
    %1192 = vmatpush.bf16.msra.mxu0 %v1099
    %1193 = vmatpush.bf16.msra.mxu0 %v1098
    %1194 = vmatpush.bf16.msra.mxu0 %v1097
    %1195 = vmatpush.bf16.msra.mxu0 %v1096
    %1196 = vmatpush.bf16.msra.mxu0 %v1095
    %1197 = vmatmul.bf16.gmra.mxu0 %v870
    %v1198 = vpop.f32.mrf.mxu0
    %v1199 = vadd.f32 %v1181, %v1198
    %v1200 = vpop.f32.mrf.mxu0
    %v1201 = vadd.f32 %v1183, %v1200
    %1202 = vmatmul.bf16.gmra.mxu0 %v874
    %v1203 = vpop.f32.mrf.mxu0
    %v1204 = vadd.f32 %v1186, %v1203
    %v1205 = vpop.f32.mrf.mxu0
    %1206 = vdwg.mxu0
    %1207 = vst [vmem:[%s5] sm:$0xff] %v1199
    %1208 = vst [vmem:[%s5 + $0x8] sm:$0xff] %v1201
    %1209 = vst [vmem:[%s5 + $0x10] sm:$0xff] %v1204
    // Predicated region
    $region30: #{mlp_forward.1} parent=1 // pred_check
      _
    $region31: #{mlp_forward.1} parent=1 // pred_check_branch
      %1211 = sbr.rel (0) target = $region33
    $region32: #{mlp_forward.1} parent=1 // pred_region
      _
    $region33: #{mlp_forward.1} parent=1 // pred_fallthru
      _
    // Predicated region
    $region34: #{mlp_forward.1} parent=1 // pred_check
      _
    $region35: #{mlp_forward.1} parent=1 // pred_check_branch
      %1213 = sbr.rel (0) target = $region37
    $region36: #{mlp_forward.1} parent=1 // pred_region
      _
    $region37: #{mlp_forward.1} parent=1 // pred_fallthru
      _
    %1214 = vsyncpa [#allocation3], 1
    %1215 = vsyncpa [#allocation5], 1

</llo_original>
